<compile_context>
chip_gen: v7x
topology: tpu7x:2x2x1
jax: 0.10.0
libtpu: 0.0.40
codegen_flags: <defaults>
</compile_context>

<pallas_src>
import math

import jax
import jax.numpy as jnp
from jax import lax
from jax.experimental import pallas as pl
from jax.experimental.pallas import tpu as pltpu


def _round_up(x, m):
    return ((x + m - 1) // m) * m


def _sublane_multiple(dtype):
    # sub-32-bit dtypes pack along sublanes: 8 rows for f32, 16 for bf16, 32 for int8/fp8.
    return max(8, 32 // jnp.dtype(dtype).itemsize)


def _vmem_limit_bytes(est):
    try:
        cap = pltpu.get_tpu_info().vmem_capacity_bytes
    except Exception:
        cap = 64 * 2**20          # conservative fallback (v7x per-core VMEM)
    return int(min(cap, max(32 * 2**20, int(1.5 * est) + (2 << 20))))


def _gather_project_kernel(ids_ref, w_hbm, pw_ref, pb_ref, out_ref, emb_buf, sem):
    # ids_ref : SMEM (N_pad,) int32   scalar-prefetched, clamped token ids
    # w_hbm   : ANY  (V, E_pad)       embedding table, resident in HBM
    # pw_ref  : VMEM (E_pad, P_pad)   bf16 projection weight (transposed), single-buffered
    # pb_ref  : VMEM (1, P_pad)       f32 projection bias, single-buffered
    # out_ref : VMEM (TN, P_pad)      lane-dense f32 output tile
    # emb_buf : VMEM (2, TN, E_pad)   double-buffered gathered rows
    # sem     : DMA sems (2,)         one per slot, shared by all TN row copies of that slot
    c = pl.program_id(0)                    # core chunk ("parallel")
    j = pl.program_id(1)                    # tile within this core ("arbitrary")
    tiles_per_core = pl.num_programs(1)
    tn = out_ref.shape[0]

    def issue_tile(tile_idx, slot):
        base = tile_idx * tn

        def body(t, carry):
            tok = ids_ref[base + t]
            pltpu.make_async_copy(w_hbm.at[pl.ds(tok, 1)],
                                  emb_buf.at[slot, pl.ds(t, 1)],
                                  sem.at[slot]).start()
            return carry

        lax.fori_loop(0, tn, body, 0, unroll=8)

    slot = j % 2

    # Prime the pipeline on this core's first step.
    @pl.when(j == 0)
    def _():
        issue_tile(c * tiles_per_core, 0)

    # Prefetch the next tile's rows into the other slot BEFORE computing this tile,
    # so the small row DMAs overlap with the MXU matmul below.  (All ids_ref SMEM
    # reads happen before the wait.)
    @pl.when(j + 1 < tiles_per_core)
    def _():
        issue_tile(c * tiles_per_core + j + 1, 1 - slot)

    # One accumulated wait for all TN row copies of the current slot
    # (DMA semaphores count bytes; the (TN, E) descriptor waits for the whole slot).
    pltpu.make_async_copy(emb_buf.at[slot], emb_buf.at[slot], sem.at[slot]).wait()

    # bf16 MXU matmul with f32 accumulation; bias added in f32.
    out_ref[...] = (jnp.dot(emb_buf[slot].astype(jnp.bfloat16), pw_ref[...],
                            preferred_element_type=jnp.float32)
                    + pb_ref[...])


def _gather_kernel(ids_ref, w_hbm, out_ref, sem):
    # Pure HBM-bandwidth-bound row gather (projection_dim=None / base Embedding module).
    # Rows are DMA'd straight into the pipelined output block: no VMEM->VMEM copy,
    # output writeback is overlapped by the BlockSpec pipeline.
    tn = out_ref.shape[0]
    base = pl.program_id(0) * tn

    def body(t, carry):
        tok = ids_ref[base + t]
        pltpu.make_async_copy(w_hbm.at[pl.ds(tok, 1)],
                              out_ref.at[pl.ds(t, 1)],
                              sem.at[0]).start()
        return carry

    lax.fori_loop(0, tn, body, 0, unroll=8)
    # Single accumulated wait for all TN row copies (bytes-counting DMA semaphore).
    pltpu.make_async_copy(out_ref, out_ref, sem.at[0]).wait()


def prepare_params(weight, proj_w_t=None, proj_b=None):
    """Hoisted ONCE at parameter-prep time (never per forward call):
       * pad E to a multiple of 128 so row DMAs / output tiles are lane-dense,
       * cast the projection weight to bf16 (MXU-native) and lane-pad P to 128,
       * keep the bias in f32 (added after the f32-accumulated matmul)."""
    v, e = weight.shape
    e_pad = _round_up(e, 128)
    w = weight if e_pad == e else jnp.pad(weight, ((0, 0), (0, e_pad - e)))
    params = {"weight": w, "embed_dim": e}
    if proj_w_t is not None:
        p = proj_w_t.shape[1]
        p_pad = _round_up(p, 128)
        pw = jnp.zeros((e_pad, p_pad), jnp.bfloat16).at[:e, :p].set(
            proj_w_t.astype(jnp.bfloat16))
        pb = jnp.zeros((1, p_pad), jnp.float32).at[0, :p].set(
            proj_b.astype(jnp.float32))
        params.update(proj_w=pw, proj_b=pb, proj_dim=p)
    return params


def embedding_deprecated_forward(ids, params, *, tile_tokens=256):
    """ids: integer array of any shape.  params: from prepare_params().
    Returns ids.shape + (proj_dim,) if a projection is configured, else ids.shape + (E,)."""
    weight = params["weight"]                  # (V, E_pad), lane-padded at prep time
    e = params["embed_dim"]
    v, e_pad = weight.shape
    orig_shape = tuple(ids.shape)
    n = math.prod(orig_shape)

    # Clamp ids: TPU has no bounds check on data-dependent HBM DMAs.
    # TODO(synk): PyTorch raises on out-of-range ids; this silently clamps (add a debug assert).
    ids_flat = jnp.clip(ids.reshape(-1).astype(jnp.int32), 0, v - 1)

    sub = _sublane_multiple(weight.dtype)
    tn = min(_round_up(tile_tokens, sub), _round_up(n, sub))
    if pl.cdiv(n, tn) < 2 and tn > sub:
        # Short input: shrink the tile so there are >=2 grid steps (v7x has 2 TensorCores).
        tn = _round_up(pl.cdiv(n, 2), sub)
    ntiles = pl.cdiv(n, tn)

    w_spec = pl.BlockSpec(memory_space=pl.ANY)       # table stays in HBM

    # TODO(synk): small-vocab fast path (whole table VMEM-resident, in-kernel gather) and
    #             max_norm renormalization are not implemented; only max_norm=None is covered.

    if "proj_w" in params:
        pw, pb, p = params["proj_w"], params["proj_b"], params["proj_dim"]
        p_pad = pw.shape[1]
        ncores = 2 if ntiles >= 2 else 1             # shard token tiles across v7x's 2 TCs
        tpc = pl.cdiv(ntiles, ncores)                # sequential tiles per core
        n_pad = ncores * tpc * tn
        if n_pad != n:
            ids_flat = jnp.pad(ids_flat, (0, n_pad - n))     # pad with id 0 (harmless)

        vmem_est = (pw.size * pw.dtype.itemsize              # single-buffered weight
                    + pb.size * pb.dtype.itemsize
                    + 2 * tn * p_pad * 4                     # double-buffered out tiles
                    + 2 * tn * e_pad * weight.dtype.itemsize)  # emb double buffer
        out_flat = pl.pallas_call(
            _gather_project_kernel,
            out_shape=jax.ShapeDtypeStruct((n_pad, p_pad), jnp.float32),
            grid_spec=pltpu.PrefetchScalarGridSpec(
                num_scalar_prefetch=1,
                grid=(ncores, tpc),
                in_specs=[
                    w_spec,
                    pl.BlockSpec((e_pad, p_pad), lambda c, j, ids_s: (0, 0),
                                 pipeline_mode=pl.Buffered(1)),
                    pl.BlockSpec((1, p_pad), lambda c, j, ids_s: (0, 0),
                                 pipeline_mode=pl.Buffered(1)),
                ],
                out_specs=pl.BlockSpec((tn, p_pad),
                                       lambda c, j, ids_s: (c * tpc + j, 0)),
                scratch_shapes=[pltpu.VMEM((2, tn, e_pad), weight.dtype),
                                pltpu.SemaphoreType.DMA((2,))]),
            compiler_params=pltpu.CompilerParams(
                dimension_semantics=("parallel", "arbitrary"),
                vmem_limit_bytes=_vmem_limit_bytes(vmem_est)),
            cost_estimate=pl.CostEstimate(
                flops=2 * n_pad * e_pad * p_pad,
                transcendentals=0,
                bytes_accessed=(4 * n_pad
                                + n_pad * e_pad * weight.dtype.itemsize
                                + pw.size * pw.dtype.itemsize
                                + pb.size * pb.dtype.itemsize
                                + 4 * n_pad * p_pad)),
        )(ids_flat, weight, pw, pb)
        return out_flat[:n, :p].reshape(orig_shape + (p,))

    # No projection: pure row gather (== the plain `Embedding` module).
    n_pad = ntiles * tn
    if n_pad != n:
        ids_flat = jnp.pad(ids_flat, (0, n_pad - n))
    vmem_est = 2 * tn * e_pad * weight.dtype.itemsize
    out_flat = pl.pallas_call(
        _gather_kernel,
        out_shape=jax.ShapeDtypeStruct((n_pad, e_pad), weight.dtype),
        grid_spec=pltpu.PrefetchScalarGridSpec(
            num_scalar_prefetch=1,
            grid=(ntiles,),
            in_specs=[w_spec],
            out_specs=pl.BlockSpec((tn, e_pad), lambda i, ids_s: (i, 0)),
            scratch_shapes=[pltpu.SemaphoreType.DMA((1,))]),
        compiler_params=pltpu.CompilerParams(
            dimension_semantics=("parallel",),
            vmem_limit_bytes=_vmem_limit_bytes(vmem_est)),
        cost_estimate=pl.CostEstimate(
            flops=0, transcendentals=0,
            bytes_accessed=(4 * n_pad + 2 * n_pad * e_pad * weight.dtype.itemsize)),
    )(ids_flat, weight)
    return out_flat[:n, :e].reshape(orig_shape + (e,))


def init_params(key, num_embeddings, embedding_dim, projection_dim=None,
                padding_index=None):
    k_w, k_pw, k_pb = jax.random.split(key, 3)
    # weight.data.normal_(0, 1)
    weight = jax.random.normal(k_w, (num_embeddings, embedding_dim), dtype=jnp.float32)
    if padding_index is not None:
        weight = weight.at[padding_index].set(0.0)
    if projection_dim is None:
        return weight, None, None
    # nn.Linear(embedding_dim, projection_dim): weight (P, E), bias (P,)
    bound = 1.0 / math.sqrt(embedding_dim)
    proj_w = jax.random.uniform(k_pw, (projection_dim, embedding_dim),
                                minval=-bound, maxval=bound, dtype=jnp.float32)
    proj_b = jax.random.uniform(k_pb, (projection_dim,),
                                minval=-bound, maxval=bound, dtype=jnp.float32)
    return weight, proj_w.T, proj_b          # store projection weight transposed: (E, P)


if __name__ == "__main__":
    num_embeddings = 32
    embedding_dim = 48          # not a multiple of 128 -> exercises E lane-padding
    projection_dim = 24
    padding_index = 0
    batch, seq = 4, 8

    key = jax.random.PRNGKey(0)
    k_ids, k_params = jax.random.split(key)

    weight, proj_w_t, proj_b = init_params(
        k_params, num_embeddings, embedding_dim, projection_dim, padding_index)
    params = prepare_params(weight, proj_w_t, proj_b)       # hoisted once, NOT per call

    ids = jax.random.randint(k_ids, (batch, seq), 0, num_embeddings, dtype=jnp.int32)

    # Projection path.  tile_tokens=8 gives several tiles per core so the double-buffered
    # gather prefetch path is actually exercised at runtime.
    ref = jnp.take(weight, ids, axis=0) @ proj_w_t + proj_b        # f32 reference
    out = jax.block_until_ready(embedding_deprecated_forward(ids, params, tile_tokens=8))
    assert out.shape == (batch, seq, projection_dim)
    assert jnp.allclose(out, ref, atol=5e-2, rtol=5e-2)            # bf16 MXU operands

    # Same path with the default (large-tile) configuration.
    out2 = jax.block_until_ready(embedding_deprecated_forward(ids, params))
    assert jnp.allclose(out2, ref, atol=5e-2, rtol=5e-2)

    # projection_dim=None path (== the plain `Embedding` module), with a >2-D input.
    params_noproj = prepare_params(weight)
    ids3 = jax.random.randint(k_ids, (2, 3, 4), 0, num_embeddings, dtype=jnp.int32)
    emb = jax.block_until_ready(embedding_deprecated_forward(ids3, params_noproj))
    assert emb.shape == (2, 3, 4, embedding_dim)
    assert jnp.allclose(emb, jnp.take(weight, ids3, axis=0), atol=1e-6)

    print("KERNEL_OK")
</pallas_src>

<mosaic_0001>
module attributes {stable_mosaic.version = 11 : i64} {
  func.func @_gather_project_kernel(%arg0: i32, %arg1: i32, %arg2: memref<32xi32, #tpu.memory_space<smem>>, %arg3: memref<32x128xf32, #tpu.memory_space<any>>, %arg4: memref<128x128xbf16, #tpu.memory_space<vmem>>, %arg5: memref<1x128xf32, #tpu.memory_space<vmem>>, %arg6: memref<8x128xf32, #tpu.memory_space<vmem>>, %arg7: memref<2x8x128xf32, #tpu.memory_space<vmem>>, %arg8: memref<2x!tpu.dma_semaphore, #tpu.memory_space<semaphore_mem>>) attributes {dimension_semantics = [#tpu.dimension_semantics<parallel>, #tpu.dimension_semantics<arbitrary>], iteration_bounds = array<i64: 2, 2>, scalar_prefetch = 1 : i64, scratch_operands = 2 : i64, tpu.core_type = #tpu.core_type<tc>, window_params = [{}, {pipeline_mode = #tpu.pipeline_mode<synchronous>, transform_indices = @transform_1, window_bounds = array<i64: 128, 128>}, {pipeline_mode = #tpu.pipeline_mode<synchronous>, transform_indices = @transform_2, window_bounds = array<i64: 1, 128>}, {transform_indices = @transform_3, window_bounds = array<i64: 8, 128>}]} {
    %c2_i32 = arith.constant 2 : i32
    %c0_i32 = arith.constant 0 : i32
    %0 = arith.cmpi eq, %c2_i32, %c0_i32 : i32
    %c1_i32 = arith.constant 1 : i32
    %1 = arith.select %0, %c1_i32, %c2_i32 : i32
    %2 = arith.remsi %arg1, %1 : i32
    %c0_i32_0 = arith.constant 0 : i32
    %3 = arith.cmpi ne, %2, %c0_i32_0 : i32
    %c0_i32_1 = arith.constant 0 : i32
    %4 = arith.cmpi slt, %2, %c0_i32_1 : i32
    %c0_i32_2 = arith.constant 0 : i32
    %5 = arith.cmpi slt, %1, %c0_i32_2 : i32
    %6 = arith.xori %4, %5 : i1
    %7 = arith.andi %6, %3 : i1
    %8 = arith.addi %2, %1 : i32
    %9 = arith.select %7, %8, %2 : i32
    %c0_i32_3 = arith.constant 0 : i32
    %10 = arith.cmpi eq, %arg1, %c0_i32_3 : i32
    %11 = arith.extui %10 : i1 to i32
    %c0_i32_4 = arith.constant 0 : i32
    %12 = arith.cmpi ne, %11, %c0_i32_4 : i32
    scf.if %12 {
      %c2_i32_19 = arith.constant 2 : i32
      %33 = arith.muli %arg0, %c2_i32_19 : i32
      %c8_i32 = arith.constant 8 : i32
      %34 = arith.muli %33, %c8_i32 : i32
      %c0_i32_20 = arith.constant 0 : i32
      %35 = arith.addi %34, %c0_i32_20 : i32
      %36 = arith.index_cast %35 : i32 to index
      %37 = memref.load %arg2[%36] : memref<32xi32, #tpu.memory_space<smem>>
      %c0_i32_21 = arith.constant 0 : i32
      %c0_i32_22 = arith.constant 0 : i32
      %c0_i32_23 = arith.constant 0 : i32
      %38 = tpu.memref_slice %arg3[%37, %c0_i32_23] : memref<32x128xf32, #tpu.memory_space<any>> -> memref<1x128xf32, #tpu.memory_space<any>>
      %c0_i32_24 = arith.constant 0 : i32
      %39 = tpu.memref_slice %arg7[%c0_i32_21, %c0_i32_20, %c0_i32_24] : memref<2x8x128xf32, #tpu.memory_space<vmem>> -> memref<1x1x128xf32, #tpu.memory_space<vmem>>
      %40 = tpu.memref_squeeze %39 : memref<1x1x128xf32, #tpu.memory_space<vmem>> -> memref<1x128xf32, #tpu.memory_space<vmem>>
      %41 = tpu.memref_slice %arg8[%c0_i32_22] : memref<2x!tpu.dma_semaphore, #tpu.memory_space<semaphore_mem>> -> memref<1x!tpu.dma_semaphore, #tpu.memory_space<semaphore_mem>>
      %42 = tpu.memref_squeeze %41 : memref<1x!tpu.dma_semaphore, #tpu.memory_space<semaphore_mem>> -> memref<!tpu.dma_semaphore, #tpu.memory_space<semaphore_mem>>
      tpu.enqueue_dma source(%38 : memref<1x128xf32, #tpu.memory_space<any>>) target(%40 : memref<1x128xf32, #tpu.memory_space<vmem>>) target_semaphore(%42 : memref<!tpu.dma_semaphore, #tpu.memory_space<semaphore_mem>>)
      %c1_i32_25 = arith.constant 1 : i32
      %43 = arith.addi %34, %c1_i32_25 : i32
      %44 = arith.index_cast %43 : i32 to index
      %45 = memref.load %arg2[%44] : memref<32xi32, #tpu.memory_space<smem>>
      %c0_i32_26 = arith.constant 0 : i32
      %c0_i32_27 = arith.constant 0 : i32
      %c0_i32_28 = arith.constant 0 : i32
      %46 = tpu.memref_slice %arg3[%45, %c0_i32_28] : memref<32x128xf32, #tpu.memory_space<any>> -> memref<1x128xf32, #tpu.memory_space<any>>
      %c0_i32_29 = arith.constant 0 : i32
      %47 = tpu.memref_slice %arg7[%c0_i32_26, %c1_i32_25, %c0_i32_29] : memref<2x8x128xf32, #tpu.memory_space<vmem>> -> memref<1x1x128xf32, #tpu.memory_space<vmem>>
      %48 = tpu.memref_squeeze %47 : memref<1x1x128xf32, #tpu.memory_space<vmem>> -> memref<1x128xf32, #tpu.memory_space<vmem>>
      %49 = tpu.memref_slice %arg8[%c0_i32_27] : memref<2x!tpu.dma_semaphore, #tpu.memory_space<semaphore_mem>> -> memref<1x!tpu.dma_semaphore, #tpu.memory_space<semaphore_mem>>
      %50 = tpu.memref_squeeze %49 : memref<1x!tpu.dma_semaphore, #tpu.memory_space<semaphore_mem>> -> memref<!tpu.dma_semaphore, #tpu.memory_space<semaphore_mem>>
      tpu.enqueue_dma source(%46 : memref<1x128xf32, #tpu.memory_space<any>>) target(%48 : memref<1x128xf32, #tpu.memory_space<vmem>>) target_semaphore(%50 : memref<!tpu.dma_semaphore, #tpu.memory_space<semaphore_mem>>)
      %c2_i32_30 = arith.constant 2 : i32
      %51 = arith.addi %34, %c2_i32_30 : i32
      %52 = arith.index_cast %51 : i32 to index
      %53 = memref.load %arg2[%52] : memref<32xi32, #tpu.memory_space<smem>>
      %c0_i32_31 = arith.constant 0 : i32
      %c0_i32_32 = arith.constant 0 : i32
      %c0_i32_33 = arith.constant 0 : i32
      %54 = tpu.memref_slice %arg3[%53, %c0_i32_33] : memref<32x128xf32, #tpu.memory_space<any>> -> memref<1x128xf32, #tpu.memory_space<any>>
      %c0_i32_34 = arith.constant 0 : i32
      %55 = tpu.memref_slice %arg7[%c0_i32_31, %c2_i32_30, %c0_i32_34] : memref<2x8x128xf32, #tpu.memory_space<vmem>> -> memref<1x1x128xf32, #tpu.memory_space<vmem>>
      %56 = tpu.memref_squeeze %55 : memref<1x1x128xf32, #tpu.memory_space<vmem>> -> memref<1x128xf32, #tpu.memory_space<vmem>>
      %57 = tpu.memref_slice %arg8[%c0_i32_32] : memref<2x!tpu.dma_semaphore, #tpu.memory_space<semaphore_mem>> -> memref<1x!tpu.dma_semaphore, #tpu.memory_space<semaphore_mem>>
      %58 = tpu.memref_squeeze %57 : memref<1x!tpu.dma_semaphore, #tpu.memory_space<semaphore_mem>> -> memref<!tpu.dma_semaphore, #tpu.memory_space<semaphore_mem>>
      tpu.enqueue_dma source(%54 : memref<1x128xf32, #tpu.memory_space<any>>) target(%56 : memref<1x128xf32, #tpu.memory_space<vmem>>) target_semaphore(%58 : memref<!tpu.dma_semaphore, #tpu.memory_space<semaphore_mem>>)
      %c3_i32 = arith.constant 3 : i32
      %59 = arith.addi %34, %c3_i32 : i32
      %60 = arith.index_cast %59 : i32 to index
      %61 = memref.load %arg2[%60] : memref<32xi32, #tpu.memory_space<smem>>
      %c0_i32_35 = arith.constant 0 : i32
      %c0_i32_36 = arith.constant 0 : i32
      %c0_i32_37 = arith.constant 0 : i32
      %62 = tpu.memref_slice %arg3[%61, %c0_i32_37] : memref<32x128xf32, #tpu.memory_space<any>> -> memref<1x128xf32, #tpu.memory_space<any>>
      %c0_i32_38 = arith.constant 0 : i32
      %63 = tpu.memref_slice %arg7[%c0_i32_35, %c3_i32, %c0_i32_38] : memref<2x8x128xf32, #tpu.memory_space<vmem>> -> memref<1x1x128xf32, #tpu.memory_space<vmem>>
      %64 = tpu.memref_squeeze %63 : memref<1x1x128xf32, #tpu.memory_space<vmem>> -> memref<1x128xf32, #tpu.memory_space<vmem>>
      %65 = tpu.memref_slice %arg8[%c0_i32_36] : memref<2x!tpu.dma_semaphore, #tpu.memory_space<semaphore_mem>> -> memref<1x!tpu.dma_semaphore, #tpu.memory_space<semaphore_mem>>
      %66 = tpu.memref_squeeze %65 : memref<1x!tpu.dma_semaphore, #tpu.memory_space<semaphore_mem>> -> memref<!tpu.dma_semaphore, #tpu.memory_space<semaphore_mem>>
      tpu.enqueue_dma source(%62 : memref<1x128xf32, #tpu.memory_space<any>>) target(%64 : memref<1x128xf32, #tpu.memory_space<vmem>>) target_semaphore(%66 : memref<!tpu.dma_semaphore, #tpu.memory_space<semaphore_mem>>)
      %c4_i32 = arith.constant 4 : i32
      %67 = arith.addi %34, %c4_i32 : i32
      %68 = arith.index_cast %67 : i32 to index
      %69 = memref.load %arg2[%68] : memref<32xi32, #tpu.memory_space<smem>>
      %c0_i32_39 = arith.constant 0 : i32
      %c0_i32_40 = arith.constant 0 : i32
      %c0_i32_41 = arith.constant 0 : i32
      %70 = tpu.memref_slice %arg3[%69, %c0_i32_41] : memref<32x128xf32, #tpu.memory_space<any>> -> memref<1x128xf32, #tpu.memory_space<any>>
      %c0_i32_42 = arith.constant 0 : i32
      %71 = tpu.memref_slice %arg7[%c0_i32_39, %c4_i32, %c0_i32_42] : memref<2x8x128xf32, #tpu.memory_space<vmem>> -> memref<1x1x128xf32, #tpu.memory_space<vmem>>
      %72 = tpu.memref_squeeze %71 : memref<1x1x128xf32, #tpu.memory_space<vmem>> -> memref<1x128xf32, #tpu.memory_space<vmem>>
      %73 = tpu.memref_slice %arg8[%c0_i32_40] : memref<2x!tpu.dma_semaphore, #tpu.memory_space<semaphore_mem>> -> memref<1x!tpu.dma_semaphore, #tpu.memory_space<semaphore_mem>>
      %74 = tpu.memref_squeeze %73 : memref<1x!tpu.dma_semaphore, #tpu.memory_space<semaphore_mem>> -> memref<!tpu.dma_semaphore, #tpu.memory_space<semaphore_mem>>
      tpu.enqueue_dma source(%70 : memref<1x128xf32, #tpu.memory_space<any>>) target(%72 : memref<1x128xf32, #tpu.memory_space<vmem>>) target_semaphore(%74 : memref<!tpu.dma_semaphore, #tpu.memory_space<semaphore_mem>>)
      %c5_i32 = arith.constant 5 : i32
      %75 = arith.addi %34, %c5_i32 : i32
      %76 = arith.index_cast %75 : i32 to index
      %77 = memref.load %arg2[%76] : memref<32xi32, #tpu.memory_space<smem>>
      %c0_i32_43 = arith.constant 0 : i32
      %c0_i32_44 = arith.constant 0 : i32
      %c0_i32_45 = arith.constant 0 : i32
      %78 = tpu.memref_slice %arg3[%77, %c0_i32_45] : memref<32x128xf32, #tpu.memory_space<any>> -> memref<1x128xf32, #tpu.memory_space<any>>
      %c0_i32_46 = arith.constant 0 : i32
      %79 = tpu.memref_slice %arg7[%c0_i32_43, %c5_i32, %c0_i32_46] : memref<2x8x128xf32, #tpu.memory_space<vmem>> -> memref<1x1x128xf32, #tpu.memory_space<vmem>>
      %80 = tpu.memref_squeeze %79 : memref<1x1x128xf32, #tpu.memory_space<vmem>> -> memref<1x128xf32, #tpu.memory_space<vmem>>
      %81 = tpu.memref_slice %arg8[%c0_i32_44] : memref<2x!tpu.dma_semaphore, #tpu.memory_space<semaphore_mem>> -> memref<1x!tpu.dma_semaphore, #tpu.memory_space<semaphore_mem>>
      %82 = tpu.memref_squeeze %81 : memref<1x!tpu.dma_semaphore, #tpu.memory_space<semaphore_mem>> -> memref<!tpu.dma_semaphore, #tpu.memory_space<semaphore_mem>>
      tpu.enqueue_dma source(%78 : memref<1x128xf32, #tpu.memory_space<any>>) target(%80 : memref<1x128xf32, #tpu.memory_space<vmem>>) target_semaphore(%82 : memref<!tpu.dma_semaphore, #tpu.memory_space<semaphore_mem>>)
      %c6_i32 = arith.constant 6 : i32
      %83 = arith.addi %34, %c6_i32 : i32
      %84 = arith.index_cast %83 : i32 to index
      %85 = memref.load %arg2[%84] : memref<32xi32, #tpu.memory_space<smem>>
      %c0_i32_47 = arith.constant 0 : i32
      %c0_i32_48 = arith.constant 0 : i32
      %c0_i32_49 = arith.constant 0 : i32
      %86 = tpu.memref_slice %arg3[%85, %c0_i32_49] : memref<32x128xf32, #tpu.memory_space<any>> -> memref<1x128xf32, #tpu.memory_space<any>>
      %c0_i32_50 = arith.constant 0 : i32
      %87 = tpu.memref_slice %arg7[%c0_i32_47, %c6_i32, %c0_i32_50] : memref<2x8x128xf32, #tpu.memory_space<vmem>> -> memref<1x1x128xf32, #tpu.memory_space<vmem>>
      %88 = tpu.memref_squeeze %87 : memref<1x1x128xf32, #tpu.memory_space<vmem>> -> memref<1x128xf32, #tpu.memory_space<vmem>>
      %89 = tpu.memref_slice %arg8[%c0_i32_48] : memref<2x!tpu.dma_semaphore, #tpu.memory_space<semaphore_mem>> -> memref<1x!tpu.dma_semaphore, #tpu.memory_space<semaphore_mem>>
      %90 = tpu.memref_squeeze %89 : memref<1x!tpu.dma_semaphore, #tpu.memory_space<semaphore_mem>> -> memref<!tpu.dma_semaphore, #tpu.memory_space<semaphore_mem>>
      tpu.enqueue_dma source(%86 : memref<1x128xf32, #tpu.memory_space<any>>) target(%88 : memref<1x128xf32, #tpu.memory_space<vmem>>) target_semaphore(%90 : memref<!tpu.dma_semaphore, #tpu.memory_space<semaphore_mem>>)
      %c7_i32 = arith.constant 7 : i32
      %91 = arith.addi %34, %c7_i32 : i32
      %92 = arith.index_cast %91 : i32 to index
      %93 = memref.load %arg2[%92] : memref<32xi32, #tpu.memory_space<smem>>
      %c0_i32_51 = arith.constant 0 : i32
      %c0_i32_52 = arith.constant 0 : i32
      %c0_i32_53 = arith.constant 0 : i32
      %94 = tpu.memref_slice %arg3[%93, %c0_i32_53] : memref<32x128xf32, #tpu.memory_space<any>> -> memref<1x128xf32, #tpu.memory_space<any>>
      %c0_i32_54 = arith.constant 0 : i32
      %95 = tpu.memref_slice %arg7[%c0_i32_51, %c7_i32, %c0_i32_54] : memref<2x8x128xf32, #tpu.memory_space<vmem>> -> memref<1x1x128xf32, #tpu.memory_space<vmem>>
      %96 = tpu.memref_squeeze %95 : memref<1x1x128xf32, #tpu.memory_space<vmem>> -> memref<1x128xf32, #tpu.memory_space<vmem>>
      %97 = tpu.memref_slice %arg8[%c0_i32_52] : memref<2x!tpu.dma_semaphore, #tpu.memory_space<semaphore_mem>> -> memref<1x!tpu.dma_semaphore, #tpu.memory_space<semaphore_mem>>
      %98 = tpu.memref_squeeze %97 : memref<1x!tpu.dma_semaphore, #tpu.memory_space<semaphore_mem>> -> memref<!tpu.dma_semaphore, #tpu.memory_space<semaphore_mem>>
      tpu.enqueue_dma source(%94 : memref<1x128xf32, #tpu.memory_space<any>>) target(%96 : memref<1x128xf32, #tpu.memory_space<vmem>>) target_semaphore(%98 : memref<!tpu.dma_semaphore, #tpu.memory_space<semaphore_mem>>)
      %c8_i32_55 = arith.constant 8 : i32
    } else {
    }
    %c1_i32_5 = arith.constant 1 : i32
    %13 = arith.addi %arg1, %c1_i32_5 : i32
    %c2_i32_6 = arith.constant 2 : i32
    %14 = arith.cmpi slt, %13, %c2_i32_6 : i32
    %15 = arith.extui %14 : i1 to i32
    %c0_i32_7 = arith.constant 0 : i32
    %16 = arith.cmpi ne, %15, %c0_i32_7 : i32
    scf.if %16 {
      %c2_i32_19 = arith.constant 2 : i32
      %33 = arith.muli %arg0, %c2_i32_19 : i32
      %34 = arith.addi %33, %arg1 : i32
      %c1_i32_20 = arith.constant 1 : i32
      %35 = arith.addi %34, %c1_i32_20 : i32
      %c1_i32_21 = arith.constant 1 : i32
      %36 = arith.subi %c1_i32_21, %9 : i32
      %c8_i32 = arith.constant 8 : i32
      %37 = arith.muli %35, %c8_i32 : i32
      %c0_i32_22 = arith.constant 0 : i32
      %38 = arith.addi %37, %c0_i32_22 : i32
      %39 = arith.index_cast %38 : i32 to index
      %40 = memref.load %arg2[%39] : memref<32xi32, #tpu.memory_space<smem>>
      %c0_i32_23 = arith.constant 0 : i32
      %41 = tpu.memref_slice %arg3[%40, %c0_i32_23] : memref<32x128xf32, #tpu.memory_space<any>> -> memref<1x128xf32, #tpu.memory_space<any>>
      %c0_i32_24 = arith.constant 0 : i32
      %42 = tpu.memref_slice %arg7[%36, %c0_i32_22, %c0_i32_24] : memref<2x8x128xf32, #tpu.memory_space<vmem>> -> memref<1x1x128xf32, #tpu.memory_space<vmem>>
      %43 = tpu.memref_squeeze %42 : memref<1x1x128xf32, #tpu.memory_space<vmem>> -> memref<1x128xf32, #tpu.memory_space<vmem>>
      %44 = tpu.memref_slice %arg8[%36] : memref<2x!tpu.dma_semaphore, #tpu.memory_space<semaphore_mem>> -> memref<1x!tpu.dma_semaphore, #tpu.memory_space<semaphore_mem>>
      %45 = tpu.memref_squeeze %44 : memref<1x!tpu.dma_semaphore, #tpu.memory_space<semaphore_mem>> -> memref<!tpu.dma_semaphore, #tpu.memory_space<semaphore_mem>>
      tpu.enqueue_dma source(%41 : memref<1x128xf32, #tpu.memory_space<any>>) target(%43 : memref<1x128xf32, #tpu.memory_space<vmem>>) target_semaphore(%45 : memref<!tpu.dma_semaphore, #tpu.memory_space<semaphore_mem>>)
      %c1_i32_25 = arith.constant 1 : i32
      %46 = arith.addi %37, %c1_i32_25 : i32
      %47 = arith.index_cast %46 : i32 to index
      %48 = memref.load %arg2[%47] : memref<32xi32, #tpu.memory_space<smem>>
      %c0_i32_26 = arith.constant 0 : i32
      %49 = tpu.memref_slice %arg3[%48, %c0_i32_26] : memref<32x128xf32, #tpu.memory_space<any>> -> memref<1x128xf32, #tpu.memory_space<any>>
      %c0_i32_27 = arith.constant 0 : i32
      %50 = tpu.memref_slice %arg7[%36, %c1_i32_25, %c0_i32_27] : memref<2x8x128xf32, #tpu.memory_space<vmem>> -> memref<1x1x128xf32, #tpu.memory_space<vmem>>
      %51 = tpu.memref_squeeze %50 : memref<1x1x128xf32, #tpu.memory_space<vmem>> -> memref<1x128xf32, #tpu.memory_space<vmem>>
      %52 = tpu.memref_slice %arg8[%36] : memref<2x!tpu.dma_semaphore, #tpu.memory_space<semaphore_mem>> -> memref<1x!tpu.dma_semaphore, #tpu.memory_space<semaphore_mem>>
      %53 = tpu.memref_squeeze %52 : memref<1x!tpu.dma_semaphore, #tpu.memory_space<semaphore_mem>> -> memref<!tpu.dma_semaphore, #tpu.memory_space<semaphore_mem>>
      tpu.enqueue_dma source(%49 : memref<1x128xf32, #tpu.memory_space<any>>) target(%51 : memref<1x128xf32, #tpu.memory_space<vmem>>) target_semaphore(%53 : memref<!tpu.dma_semaphore, #tpu.memory_space<semaphore_mem>>)
      %c2_i32_28 = arith.constant 2 : i32
      %54 = arith.addi %37, %c2_i32_28 : i32
      %55 = arith.index_cast %54 : i32 to index
      %56 = memref.load %arg2[%55] : memref<32xi32, #tpu.memory_space<smem>>
      %c0_i32_29 = arith.constant 0 : i32
      %57 = tpu.memref_slice %arg3[%56, %c0_i32_29] : memref<32x128xf32, #tpu.memory_space<any>> -> memref<1x128xf32, #tpu.memory_space<any>>
      %c0_i32_30 = arith.constant 0 : i32
      %58 = tpu.memref_slice %arg7[%36, %c2_i32_28, %c0_i32_30] : memref<2x8x128xf32, #tpu.memory_space<vmem>> -> memref<1x1x128xf32, #tpu.memory_space<vmem>>
      %59 = tpu.memref_squeeze %58 : memref<1x1x128xf32, #tpu.memory_space<vmem>> -> memref<1x128xf32, #tpu.memory_space<vmem>>
      %60 = tpu.memref_slice %arg8[%36] : memref<2x!tpu.dma_semaphore, #tpu.memory_space<semaphore_mem>> -> memref<1x!tpu.dma_semaphore, #tpu.memory_space<semaphore_mem>>
      %61 = tpu.memref_squeeze %60 : memref<1x!tpu.dma_semaphore, #tpu.memory_space<semaphore_mem>> -> memref<!tpu.dma_semaphore, #tpu.memory_space<semaphore_mem>>
      tpu.enqueue_dma source(%57 : memref<1x128xf32, #tpu.memory_space<any>>) target(%59 : memref<1x128xf32, #tpu.memory_space<vmem>>) target_semaphore(%61 : memref<!tpu.dma_semaphore, #tpu.memory_space<semaphore_mem>>)
      %c3_i32 = arith.constant 3 : i32
      %62 = arith.addi %37, %c3_i32 : i32
      %63 = arith.index_cast %62 : i32 to index
      %64 = memref.load %arg2[%63] : memref<32xi32, #tpu.memory_space<smem>>
      %c0_i32_31 = arith.constant 0 : i32
      %65 = tpu.memref_slice %arg3[%64, %c0_i32_31] : memref<32x128xf32, #tpu.memory_space<any>> -> memref<1x128xf32, #tpu.memory_space<any>>
      %c0_i32_32 = arith.constant 0 : i32
      %66 = tpu.memref_slice %arg7[%36, %c3_i32, %c0_i32_32] : memref<2x8x128xf32, #tpu.memory_space<vmem>> -> memref<1x1x128xf32, #tpu.memory_space<vmem>>
      %67 = tpu.memref_squeeze %66 : memref<1x1x128xf32, #tpu.memory_space<vmem>> -> memref<1x128xf32, #tpu.memory_space<vmem>>
      %68 = tpu.memref_slice %arg8[%36] : memref<2x!tpu.dma_semaphore, #tpu.memory_space<semaphore_mem>> -> memref<1x!tpu.dma_semaphore, #tpu.memory_space<semaphore_mem>>
      %69 = tpu.memref_squeeze %68 : memref<1x!tpu.dma_semaphore, #tpu.memory_space<semaphore_mem>> -> memref<!tpu.dma_semaphore, #tpu.memory_space<semaphore_mem>>
      tpu.enqueue_dma source(%65 : memref<1x128xf32, #tpu.memory_space<any>>) target(%67 : memref<1x128xf32, #tpu.memory_space<vmem>>) target_semaphore(%69 : memref<!tpu.dma_semaphore, #tpu.memory_space<semaphore_mem>>)
      %c4_i32 = arith.constant 4 : i32
      %70 = arith.addi %37, %c4_i32 : i32
      %71 = arith.index_cast %70 : i32 to index
      %72 = memref.load %arg2[%71] : memref<32xi32, #tpu.memory_space<smem>>
      %c0_i32_33 = arith.constant 0 : i32
      %73 = tpu.memref_slice %arg3[%72, %c0_i32_33] : memref<32x128xf32, #tpu.memory_space<any>> -> memref<1x128xf32, #tpu.memory_space<any>>
      %c0_i32_34 = arith.constant 0 : i32
      %74 = tpu.memref_slice %arg7[%36, %c4_i32, %c0_i32_34] : memref<2x8x128xf32, #tpu.memory_space<vmem>> -> memref<1x1x128xf32, #tpu.memory_space<vmem>>
      %75 = tpu.memref_squeeze %74 : memref<1x1x128xf32, #tpu.memory_space<vmem>> -> memref<1x128xf32, #tpu.memory_space<vmem>>
      %76 = tpu.memref_slice %arg8[%36] : memref<2x!tpu.dma_semaphore, #tpu.memory_space<semaphore_mem>> -> memref<1x!tpu.dma_semaphore, #tpu.memory_space<semaphore_mem>>
      %77 = tpu.memref_squeeze %76 : memref<1x!tpu.dma_semaphore, #tpu.memory_space<semaphore_mem>> -> memref<!tpu.dma_semaphore, #tpu.memory_space<semaphore_mem>>
      tpu.enqueue_dma source(%73 : memref<1x128xf32, #tpu.memory_space<any>>) target(%75 : memref<1x128xf32, #tpu.memory_space<vmem>>) target_semaphore(%77 : memref<!tpu.dma_semaphore, #tpu.memory_space<semaphore_mem>>)
      %c5_i32 = arith.constant 5 : i32
      %78 = arith.addi %37, %c5_i32 : i32
      %79 = arith.index_cast %78 : i32 to index
      %80 = memref.load %arg2[%79] : memref<32xi32, #tpu.memory_space<smem>>
      %c0_i32_35 = arith.constant 0 : i32
      %81 = tpu.memref_slice %arg3[%80, %c0_i32_35] : memref<32x128xf32, #tpu.memory_space<any>> -> memref<1x128xf32, #tpu.memory_space<any>>
      %c0_i32_36 = arith.constant 0 : i32
      %82 = tpu.memref_slice %arg7[%36, %c5_i32, %c0_i32_36] : memref<2x8x128xf32, #tpu.memory_space<vmem>> -> memref<1x1x128xf32, #tpu.memory_space<vmem>>
      %83 = tpu.memref_squeeze %82 : memref<1x1x128xf32, #tpu.memory_space<vmem>> -> memref<1x128xf32, #tpu.memory_space<vmem>>
      %84 = tpu.memref_slice %arg8[%36] : memref<2x!tpu.dma_semaphore, #tpu.memory_space<semaphore_mem>> -> memref<1x!tpu.dma_semaphore, #tpu.memory_space<semaphore_mem>>
      %85 = tpu.memref_squeeze %84 : memref<1x!tpu.dma_semaphore, #tpu.memory_space<semaphore_mem>> -> memref<!tpu.dma_semaphore, #tpu.memory_space<semaphore_mem>>
      tpu.enqueue_dma source(%81 : memref<1x128xf32, #tpu.memory_space<any>>) target(%83 : memref<1x128xf32, #tpu.memory_space<vmem>>) target_semaphore(%85 : memref<!tpu.dma_semaphore, #tpu.memory_space<semaphore_mem>>)
      %c6_i32 = arith.constant 6 : i32
      %86 = arith.addi %37, %c6_i32 : i32
      %87 = arith.index_cast %86 : i32 to index
      %88 = memref.load %arg2[%87] : memref<32xi32, #tpu.memory_space<smem>>
      %c0_i32_37 = arith.constant 0 : i32
      %89 = tpu.memref_slice %arg3[%88, %c0_i32_37] : memref<32x128xf32, #tpu.memory_space<any>> -> memref<1x128xf32, #tpu.memory_space<any>>
      %c0_i32_38 = arith.constant 0 : i32
      %90 = tpu.memref_slice %arg7[%36, %c6_i32, %c0_i32_38] : memref<2x8x128xf32, #tpu.memory_space<vmem>> -> memref<1x1x128xf32, #tpu.memory_space<vmem>>
      %91 = tpu.memref_squeeze %90 : memref<1x1x128xf32, #tpu.memory_space<vmem>> -> memref<1x128xf32, #tpu.memory_space<vmem>>
      %92 = tpu.memref_slice %arg8[%36] : memref<2x!tpu.dma_semaphore, #tpu.memory_space<semaphore_mem>> -> memref<1x!tpu.dma_semaphore, #tpu.memory_space<semaphore_mem>>
      %93 = tpu.memref_squeeze %92 : memref<1x!tpu.dma_semaphore, #tpu.memory_space<semaphore_mem>> -> memref<!tpu.dma_semaphore, #tpu.memory_space<semaphore_mem>>
      tpu.enqueue_dma source(%89 : memref<1x128xf32, #tpu.memory_space<any>>) target(%91 : memref<1x128xf32, #tpu.memory_space<vmem>>) target_semaphore(%93 : memref<!tpu.dma_semaphore, #tpu.memory_space<semaphore_mem>>)
      %c7_i32 = arith.constant 7 : i32
      %94 = arith.addi %37, %c7_i32 : i32
      %95 = arith.index_cast %94 : i32 to index
      %96 = memref.load %arg2[%95] : memref<32xi32, #tpu.memory_space<smem>>
      %c0_i32_39 = arith.constant 0 : i32
      %97 = tpu.memref_slice %arg3[%96, %c0_i32_39] : memref<32x128xf32, #tpu.memory_space<any>> -> memref<1x128xf32, #tpu.memory_space<any>>
      %c0_i32_40 = arith.constant 0 : i32
      %98 = tpu.memref_slice %arg7[%36, %c7_i32, %c0_i32_40] : memref<2x8x128xf32, #tpu.memory_space<vmem>> -> memref<1x1x128xf32, #tpu.memory_space<vmem>>
      %99 = tpu.memref_squeeze %98 : memref<1x1x128xf32, #tpu.memory_space<vmem>> -> memref<1x128xf32, #tpu.memory_space<vmem>>
      %100 = tpu.memref_slice %arg8[%36] : memref<2x!tpu.dma_semaphore, #tpu.memory_space<semaphore_mem>> -> memref<1x!tpu.dma_semaphore, #tpu.memory_space<semaphore_mem>>
      %101 = tpu.memref_squeeze %100 : memref<1x!tpu.dma_semaphore, #tpu.memory_space<semaphore_mem>> -> memref<!tpu.dma_semaphore, #tpu.memory_space<semaphore_mem>>
      tpu.enqueue_dma source(%97 : memref<1x128xf32, #tpu.memory_space<any>>) target(%99 : memref<1x128xf32, #tpu.memory_space<vmem>>) target_semaphore(%101 : memref<!tpu.dma_semaphore, #tpu.memory_space<semaphore_mem>>)
      %c8_i32_41 = arith.constant 8 : i32
    } else {
    }
    %c0_i32_8 = arith.constant 0 : i32
    %c0_i32_9 = arith.constant 0 : i32
    %17 = tpu.memref_slice %arg7[%9, %c0_i32_8, %c0_i32_9] : memref<2x8x128xf32, #tpu.memory_space<vmem>> -> memref<1x8x128xf32, #tpu.memory_space<vmem>>
    %18 = tpu.memref_squeeze %17 : memref<1x8x128xf32, #tpu.memory_space<vmem>> -> memref<8x128xf32, #tpu.memory_space<vmem>>
    %c0_i32_10 = arith.constant 0 : i32
    %c0_i32_11 = arith.constant 0 : i32
    %19 = tpu.memref_slice %arg7[%9, %c0_i32_10, %c0_i32_11] : memref<2x8x128xf32, #tpu.memory_space<vmem>> -> memref<1x8x128xf32, #tpu.memory_space<vmem>>
    %20 = tpu.memref_squeeze %19 : memref<1x8x128xf32, #tpu.memory_space<vmem>> -> memref<8x128xf32, #tpu.memory_space<vmem>>
    %21 = tpu.memref_slice %arg8[%9] : memref<2x!tpu.dma_semaphore, #tpu.memory_space<semaphore_mem>> -> memref<1x!tpu.dma_semaphore, #tpu.memory_space<semaphore_mem>>
    %22 = tpu.memref_squeeze %21 : memref<1x!tpu.dma_semaphore, #tpu.memory_space<semaphore_mem>> -> memref<!tpu.dma_semaphore, #tpu.memory_space<semaphore_mem>>
    tpu.wait_dma2 semaphore(%22 : memref<!tpu.dma_semaphore, #tpu.memory_space<semaphore_mem>>) src(%18 : memref<8x128xf32, #tpu.memory_space<vmem>>) dst(%20 : memref<8x128xf32, #tpu.memory_space<vmem>>)
    %23 = arith.index_cast %9 : i32 to index
    %c0 = arith.constant 0 : index
    %c0_12 = arith.constant 0 : index
    %24 = vector.load %arg7[%23, %c0, %c0_12] : memref<2x8x128xf32, #tpu.memory_space<vmem>>, vector<1x8x128xf32>
    %25 = vector.shape_cast %24 : vector<1x8x128xf32> to vector<8x128xf32>
    %26 = arith.truncf %25 : vector<8x128xf32> to vector<8x128xbf16>
    %c0_13 = arith.constant 0 : index
    %c0_14 = arith.constant 0 : index
    %27 = vector.load %arg4[%c0_13, %c0_14] : memref<128x128xbf16, #tpu.memory_space<vmem>>, vector<128x128xbf16>
    %cst = arith.constant dense<0.000000e+00> : vector<8x128xf32>
    %28 = tpu.matmul %26, %27, %cst {dimension_numbers = #tpu.dot_dimension_numbers<[1], [0], [0], [1], [0, 0, 1, 1], [], []>} : vector<8x128xbf16>, vector<128x128xbf16>, vector<8x128xf32> -> vector<8x128xf32>
    %c0_15 = arith.constant 0 : index
    %c0_16 = arith.constant 0 : index
    %29 = vector.load %arg5[%c0_15, %c0_16] : memref<1x128xf32, #tpu.memory_space<vmem>>, vector<1x128xf32>
    %30 = vector.broadcast %29 : vector<1x128xf32> to vector<8x128xf32>
    %31 = arith.addf %28, %30 : vector<8x128xf32>
    %c0_17 = arith.constant 0 : index
    %c0_18 = arith.constant 0 : index
    %32 = vector.load %arg6[%c0_17, %c0_18] : memref<8x128xf32, #tpu.memory_space<vmem>>, vector<8x128xf32>
    tpu.vector_store %arg6[%c0_17, %c0_18], %31 {strides = array<i32>} : memref<8x128xf32, #tpu.memory_space<vmem>>, vector<8x128xf32>,
    return
  }
  func.func @transform_1(%arg0: i32, %arg1: i32, %arg2: memref<32xi32, #tpu.memory_space<smem>>) -> (i32, i32) {
    %c0_i32 = arith.constant 0 : i32
    %c0_i32_0 = arith.constant 0 : i32
    %c0_i32_1 = arith.constant 0 : i32
    return %c0_i32, %c0_i32_0 : i32, i32
  }
  func.func @transform_2(%arg0: i32, %arg1: i32, %arg2: memref<32xi32, #tpu.memory_space<smem>>) -> (i32, i32) {
    %c0_i32 = arith.constant 0 : i32
    %c0_i32_0 = arith.constant 0 : i32
    %c0_i32_1 = arith.constant 0 : i32
    return %c0_i32, %c0_i32_0 : i32, i32
  }
  func.func @transform_3(%arg0: i32, %arg1: i32, %arg2: memref<32xi32, #tpu.memory_space<smem>>) -> (i32, i32) {
    %c2_i32 = arith.constant 2 : i32
    %0 = arith.muli %arg0, %c2_i32 : i32
    %1 = arith.addi %0, %arg1 : i32
    %c0_i32 = arith.constant 0 : i32
    %c0_i32_0 = arith.constant 0 : i32
    return %1, %c0_i32 : i32, i32
  }
}

</mosaic_0001>

<llo_original>
// kernel: tpu_custom_call.1
$region0: #{tpu_custom_call.1}
  #allocation0 [shape = 'u32[]', space=smem, size = 0x4, offset = 0x4, fixed_abs, tag = 'smem constant byte address 0x4 - core index']
  #allocation1 [shape = 'u32[144,128]{1,0:T(1,128)}', space=vmem, size = 0x12000, scoped, tag = 'internal scratch']
  #allocation2 [shape = 'f32[2,8,128]{2,1,0:T(8,128)}', space=vmem, size = 0x2000, scoped, tag = 'scratch operand']
  #allocation3 [shape = 's32[2]{0}', space=sflag, size = 0x8, scoped, tag = 'scratch operand']
  #allocation4 [shape = 's32[1]{0}', space=sflag, size = 0x4, scoped, tag = 'scoped memory for tpu_custom_call.1']
  #allocation5 [shape = 'u8[512]{0}', space=smem, size = 0x200, scoped, tag = 'prefetched SMEM operand 0']
  #allocation10 [shape = 's32[]', space=sflag, size = 0x4, offset = 0, fixed_abs, tag = 'sflag constant byte address 0x0 - dummy sync flag']
  #allocation11 [shape = 's32[]', space=sflag, size = 0x4, offset = 0, fixed_abs, tag = 'sflag constant byte address 0x0 - dummy sync flag']
  #allocation12 [shape = 'u32[]', space=smem, size = 0x4, offset = 0x44, fixed_abs, tag = 'smem constant byte address 0x44 - assertion arg 0']
  #allocation13 [shape = 'u32[]', space=smem, size = 0x4, offset = 0x48, fixed_abs, tag = 'smem constant byte address 0x48 - assertion arg 1']
  #allocation14 [shape = 's32[]', space=sflag, size = 0x4, offset = 0, fixed_abs, tag = 'sflag constant byte address 0x0 - dummy sync flag']
  #allocation15 [shape = 's32[]', space=sflag, size = 0x4, offset = 0, fixed_abs, tag = 'sflag constant byte address 0x0 - dummy sync flag']
  #allocation16 [shape = 's32[]', space=sflag, size = 0x4, offset = 0, fixed_abs, tag = 'sflag constant byte address 0x0 - dummy sync flag']
  #allocation17 [shape = 's32[]', space=sflag, size = 0x4, offset = 0, fixed_abs, tag = 'sflag constant byte address 0x0 - dummy sync flag']
  #allocation18 [shape = 's32[]', space=sflag, size = 0x4, offset = 0, fixed_abs, tag = 'sflag constant byte address 0x0 - dummy sync flag']
  #allocation19 [shape = 's32[]', space=sflag, size = 0x4, offset = 0, fixed_abs, tag = 'sflag constant byte address 0x0 - dummy sync flag']
  #allocation20 [shape = 's32[]', space=sflag, size = 0x4, offset = 0, fixed_abs, tag = 'sflag constant byte address 0x0 - dummy sync flag']
  #allocation21 [shape = 's32[]', space=sflag, size = 0x4, offset = 0, fixed_abs, tag = 'sflag constant byte address 0x0 - dummy sync flag']
  #allocation22 [shape = 's32[]', space=sflag, size = 0x4, offset = 0, fixed_abs, tag = 'sflag constant byte address 0x0 - dummy sync flag']
  #allocation23 [shape = 's32[]', space=sflag, size = 0x4, offset = 0, fixed_abs, tag = 'sflag constant byte address 0x0 - dummy sync flag']
  #allocation24 [shape = 's32[]', space=sflag, size = 0x4, offset = 0, fixed_abs, tag = 'sflag constant byte address 0x0 - dummy sync flag']
  #allocation25 [shape = 's32[]', space=sflag, size = 0x4, offset = 0, fixed_abs, tag = 'sflag constant byte address 0x0 - dummy sync flag']
  #allocation26 [shape = 's32[]', space=sflag, size = 0x4, offset = 0, fixed_abs, tag = 'sflag constant byte address 0x0 - dummy sync flag']
  #allocation27 [shape = 's32[]', space=sflag, size = 0x4, offset = 0, fixed_abs, tag = 'sflag constant byte address 0x0 - dummy sync flag']
  #allocation28 [shape = 's32[]', space=sflag, size = 0x4, offset = 0, fixed_abs, tag = 'sflag constant byte address 0x0 - dummy sync flag']
  #allocation29 [shape = 's32[]', space=sflag, size = 0x4, offset = 0, fixed_abs, tag = 'sflag constant byte address 0x0 - dummy sync flag']
  #allocation30 [shape = 's32[]', space=sflag, size = 0x4, offset = 0, fixed_abs, tag = 'sflag constant byte address 0x0 - dummy sync flag']
  #allocation31 [shape = 's32[]', space=sflag, size = 0x4, offset = 0, fixed_abs, tag = 'sflag constant byte address 0x0 - dummy sync flag']
  #allocation32 [shape = 's32[]', space=sflag, size = 0x4, offset = 0, fixed_abs, tag = 'sflag constant byte address 0x0 - dummy sync flag']
  #allocation33 [shape = 's32[]', space=sflag, size = 0x4, offset = 0, fixed_abs, tag = 'sflag constant byte address 0x0 - dummy sync flag']
  #allocation34 [shape = 's32[]', space=sflag, size = 0x4, offset = 0, fixed_abs, tag = 'sflag constant byte address 0x0 - dummy sync flag']
  #allocation35 [shape = 's32[]', space=sflag, size = 0x4, offset = 0, fixed_abs, tag = 'sflag constant byte address 0x0 - dummy sync flag']
  #allocation36 [shape = 's32[]', space=sflag, size = 0x4, offset = 0, fixed_abs, tag = 'sflag constant byte address 0x0 - dummy sync flag']
  #allocation37 [shape = 's32[]', space=sflag, size = 0x4, offset = 0, fixed_abs, tag = 'sflag constant byte address 0x0 - dummy sync flag']
  #allocation38 [shape = 's32[]', space=sflag, size = 0x4, offset = 0, fixed_abs, tag = 'sflag constant byte address 0x0 - dummy sync flag']
  #allocation39 [shape = 's32[]', space=sflag, size = 0x4, offset = 0, fixed_abs, tag = 'sflag constant byte address 0x0 - dummy sync flag']
  #allocation40 [shape = 's32[]', space=sflag, size = 0x4, offset = 0, fixed_abs, tag = 'sflag constant byte address 0x0 - dummy sync flag']
  #allocation41 [shape = 's32[]', space=sflag, size = 0x4, offset = 0, fixed_abs, tag = 'sflag constant byte address 0x0 - dummy sync flag']
  #allocation42 [shape = 's32[]', space=sflag, size = 0x4, offset = 0, fixed_abs, tag = 'sflag constant byte address 0x0 - dummy sync flag']
  #allocation43 [shape = 's32[]', space=sflag, size = 0x4, offset = 0, fixed_abs, tag = 'sflag constant byte address 0x0 - dummy sync flag']
  %s0 = inlined_call_operand.hbm [shape: s32[32], index: 0, kind: input, shape index: {}]
  %s1 = inlined_call_operand.hbm [shape: f32[32,128], index: 1, kind: input, shape index: {}]
  %s2 = inlined_call_operand.hbm [shape: bf16[128,128], index: 2, kind: input, shape index: {}]
  %s3 = inlined_call_operand.vmem [shape: f32[1,128], index: 3, kind: input, shape index: {}]
  %s4 = inlined_call_operand.hbm [shape: f32[32,128], index: 4, kind: output, shape index: {}]
  %s5 = sld [smem:[#allocation0]]
  $region117: #{tpu_custom_call.1} parent=0
    _
  %s7 = ssub.s32 1, %s5
  %s8 = scalar_select 0, %s7, %s5
  %10 = dma.hbm_to_smem %s0, 16, [#allocation5], [#allocation4]
  %11 = dma.done [#allocation4], 16
  %12 = sfence
  $region1: #{tpu_custom_call.1} parent=0
    #allocation6 [shape = 'u8[32768]{0}', space=vmem, size = 0x8000, scoped, tag = 'input window, operand 2, single buffered']
    #allocation7 [shape = 's32[2]{0}', space=sflag, size = 0x8, scoped, tag = 'scoped memory for tpu_custom_call.1']
    #allocation8 [shape = 's32[2]{0}', space=sflag, size = 0x8, scoped, tag = 'scoped memory for tpu_custom_call.1']
    #allocation9 [shape = 'u8[8192]{0}', space=vmem, size = 0x2000, scoped, tag = 'output window, operand 0']
    %13 = vsyncpa [#allocation7], 0
    %14 = vsyncpa [#allocation8], 0
    %s15 = scalar_lea.sflag [#allocation8], 1
    %16 = vsyncpa %s15, 0
    loop: start=0, step=1, limit=6
    $region2: #{tpu_custom_call.1} parent=1 // loop_pre_header
      _
    $region3: #{tpu_custom_call.1} parent=1 // loop_header
      %s18 = sphi 0, %s22
      %p19 = scmp.ge.s32.totalorder %s18, 6
      %s25 = sphi 0, %s37
      %s26 = sphi 0, %s33
      %s27 = sphi 0, %s25
      %s28 = sphi 0, %s26
      %s29 = sphi 0, %s27
      %s30 = sphi 0, %s28
      %s38 = sphi 0, %s38
      %s40 = sphi 0, %s38
      %s41 = sphi 0, %s40
      %s55 = sphi 0, %s41
      %s59 = sphi 0, %s59
      %s61 = sphi 0, %s59
      %s62 = sphi 0, %s61
      %s76 = sphi 0, %s62
      %s86 = sphi 0, %s88
      %s89 = sphi 0, %s86
      %s90 = sphi 0, %s89
      %s106 = sphi 0, %s90
    $region4: #{tpu_custom_call.1} parent=1 // loop_header_branch
      %21 = sbr.rel (%p19) target = $region8
    $region5: #{tpu_custom_call.1} parent=1 // loop_body
      %s23 = ssub.s32 %s18, 1
      %s24 = ssub.s32 %s18, 2
      %s31 = sadd.s32 1, %s26
      %p32 = scmp.ge.s32.totalorder %s31, 2
      %s33 = scalar_select %p32, 0, %s31
      %s34 = sadd.s32 1, %s25
      %s35 = scalar_select %p32, %s34, %s25
      %p36 = scmp.ge.s32.totalorder %s35, 2
      %s37 = scalar_select %p36, 0, %s35
      %s39 = sadd.s32 %s38, 1
      %p42 = scmp.eq.s32.totalorder %s18, 3
      %p43 = scmp.ne.s32.totalorder %s38, %s40
      %p44 = scmp.eq.s32.totalorder %s18, 0
      %p45 = por %p43, %p44
      %p46 = scmp.ne.s32.totalorder %s38, %s40
      %p47 = scmp.eq.s32.totalorder %s23, 3
      %p48 = por %p46, %p47
      %p49 = scmp.ne.s32.totalorder %s40, %s41
      %p50 = scmp.eq.s32.totalorder %s23, 0
      %p51 = por %p49, %p50
      %p52 = scmp.ne.s32.totalorder %s40, %s41
      %p53 = scmp.eq.s32.totalorder %s24, 3
      %p54 = por %p52, %p53
      %p56 = scmp.ne.s32.totalorder %s41, %s55
      %p57 = scmp.eq.s32.totalorder %s24, 0
      %p58 = por %p56, %p57
      %s60 = sadd.s32 %s59, 1
      %p63 = scmp.eq.s32.totalorder %s18, 3
      %p64 = scmp.ne.s32.totalorder %s59, %s61
      %p65 = scmp.eq.s32.totalorder %s18, 0
      %p66 = por %p64, %p65
      %p67 = scmp.ne.s32.totalorder %s59, %s61
      %p68 = scmp.eq.s32.totalorder %s23, 3
      %p69 = por %p67, %p68
      %p70 = scmp.ne.s32.totalorder %s61, %s62
      %p71 = scmp.eq.s32.totalorder %s23, 0
      %p72 = por %p70, %p71
      %p73 = scmp.ne.s32.totalorder %s61, %s62
      %p74 = scmp.eq.s32.totalorder %s24, 3
      %p75 = por %p73, %p74
      %p77 = scmp.ne.s32.totalorder %s62, %s76
      %p78 = scmp.eq.s32.totalorder %s24, 0
      %p79 = por %p77, %p78
      %s80 = smul.u32 %s25, 2
      %s81 = sadd.s32 %s80, %s26
      %s82 = smul.u32 %s37, 2
      %s83 = sadd.s32 %s82, %s33
      %s84 = ssub.s32 %s81, %s83
      %p85 = scmp.eq.s32.totalorder %s84, 0
      %s87 = sadd.s32 %s86, 1
      %s88 = scalar_select %p85, %s86, %s87
      %p91 = pneg %p85
      %p92 = scmp.eq.s32.totalorder %s18, 3
      %p93 = por %p91, %p92
      %p94 = scmp.ne.s32.totalorder %s86, %s89
      %p95 = scmp.eq.s32.totalorder %s18, 0
      %p96 = por %p94, %p95
      %p97 = scmp.ne.s32.totalorder %s86, %s89
      %p98 = scmp.eq.s32.totalorder %s23, 3
      %p99 = por %p97, %p98
      %p100 = scmp.ne.s32.totalorder %s89, %s90
      %p101 = scmp.eq.s32.totalorder %s23, 0
      %p102 = por %p100, %p101
      %p103 = scmp.ne.s32.totalorder %s89, %s90
      %p104 = scmp.eq.s32.totalorder %s24, 3
      %p105 = por %p103, %p104
      %p107 = scmp.ne.s32.totalorder %s90, %s106
      %p108 = scmp.eq.s32.totalorder %s24, 0
      %p109 = por %p107, %p108
      %p110 = scmp.le.s32.totalorder 1, %s18
      %p111 = scmp.lt.s32.totalorder %s18, 5
      %p112 = pnand %p110, %p111
      %p113 = pneg %p112
      // Predicated region
      $region9: #{tpu_custom_call.1} parent=5 // pred_check
        _
      $region10: #{tpu_custom_call.1} parent=5 // pred_check_branch
        %115 = sbr.rel (%p112) target = $region12
      $region11: #{tpu_custom_call.1} parent=5 // pred_region
        %s116 = ssub.s32 %s18, 1
        // Predicated region
        $region13: #{tpu_custom_call.1} parent=11 // pred_check
          %p117 = pneg %p51
        $region14: #{tpu_custom_call.1} parent=11 // pred_check_branch
          %119 = sbr.rel (%p117) target = $region16
        $region15: #{tpu_custom_call.1} parent=11 // pred_region
          %s121 = ssub.s32 1024, 1024
          %122 = vsyncadd [#allocation7], %s121
          %s123 = sshll.u32 [#allocation6], 4
          %s124 = int_to_ptr.vmem [resolvable:$true] %s123
          %129 = dma.hbm_to_vmem [thread:$0]  %s2, 1024, %s124, [#allocation7], 64, 64, 4
        $region16: #{tpu_custom_call.1} parent=11 // pred_fallthru
          _
        // Predicated region
        $region17: #{tpu_custom_call.1} parent=11 // pred_check
          %p130 = pneg %p72
        $region18: #{tpu_custom_call.1} parent=11 // pred_check_branch
          %132 = sbr.rel (%p130) target = $region20
        $region19: #{tpu_custom_call.1} parent=11 // pred_region
          _
        $region20: #{tpu_custom_call.1} parent=11 // pred_fallthru
          _
      $region12: #{tpu_custom_call.1} parent=5 // pred_fallthru
        _
      %p133 = scmp.lt.s32.totalorder %s18, 4
      // Predicated region
      $region21: #{tpu_custom_call.1} parent=5 // pred_check
        %p134 = pneg %p133
      $region22: #{tpu_custom_call.1} parent=5 // pred_check_branch
        %136 = sbr.rel (%p134) target = $region24
      $region23: #{tpu_custom_call.1} parent=5 // pred_region
        _
      $region24: #{tpu_custom_call.1} parent=5 // pred_fallthru
        _
      %p137 = scmp.le.s32.totalorder 1, %s18
      %p138 = scmp.lt.s32.totalorder %s18, 5
      %p139 = pnand %p137, %p138
      %p140 = pneg %p139
      // Predicated region
      $region25: #{tpu_custom_call.1} parent=5 // pred_check
        _
      $region26: #{tpu_custom_call.1} parent=5 // pred_check_branch
        %142 = sbr.rel (%p139) target = $region28
      $region27: #{tpu_custom_call.1} parent=5 // pred_region
        %s143 = ssub.s32 %s18, 1
        // Predicated region
        $region29: #{tpu_custom_call.1} parent=27 // pred_check
          %p144 = pneg %p51
        $region30: #{tpu_custom_call.1} parent=27 // pred_check_branch
          %146 = sbr.rel (%p144) target = $region32
        $region31: #{tpu_custom_call.1} parent=27 // pred_region
          %147 = dma.done [#allocation7], 1024
        $region32: #{tpu_custom_call.1} parent=27 // pred_fallthru
          _
        %p148 = pneg %p51
        %p149 = pneg %p48
        %p150 = pneg %p72
        %p151 = pneg %p69
        %p152 = pneg %p102
        %p153 = pneg %p99
        %s154 = sand.u32 %s89, 1
        %s155 = scalar_lea.sflag [#allocation8], %s154
        %s156 = sand.u32 %s89, 1
        %s157 = smul.addr %s156, 8
        %s158 = scalar_lea.vmem [#allocation9], %s157
        %s159 = smul.u32 %s27, 2
        %s160 = sadd.s32 %s159, %s28
        %p162 = scmp.lt.s32.totalorder %s28, 0
        %s163 = ssub.s32 0, %s28
        %s164 = scalar_select %p162, %s163, %s28
        %s165 = sand.u32 %s164, 1
        %s166 = ssub.s32 0, %s165
        %s167 = scalar_select %p162, %s166, %s165
        %p168 = scmp.ne.s32.totalorder %s167, 0
        %p169 = scmp.lt.s32.totalorder %s167, 0
        %p170 = pnand %p169, %p168
        %p171 = pneg %p170
        %s172 = sadd.s32 %s167, 2
        %s173 = scalar_select %p171, %s172, %s167
        %p174 = scmp.eq.s32.totalorder %s28, 0
        // Predicated region
        $region33: #{tpu_custom_call.1} parent=27 // pred_check
          %p175 = pneg %p174
        $region34: #{tpu_custom_call.1} parent=27 // pred_check_branch
          %177 = sbr.rel (%p175) target = $region36
        $region35: #{tpu_custom_call.1} parent=27 // pred_region
          %s178 = smul.u32 %s27, 16
          %s179 = sld [smem:[#allocation5 + %s178]]
          %s180 = smul.addr %s179, 16
          %s181 = scalar_lea.hbm %s1, %s180
          // Predicated region
          $region37: #{tpu_custom_call.1} parent=35 // pred_check
            _
          $region38: #{tpu_custom_call.1} parent=35 // pred_check_branch
            %183 = sbr.rel target = $region40
          $region39: #{tpu_custom_call.1} parent=35 // pred_region
            %184 = sst [smem:[#allocation12]] [#allocation11]
            %185 = sst [smem:[#allocation13]] [#allocation10]
          $region40: #{tpu_custom_call.1} parent=35 // pred_fallthru
            _
          %187 = shalt.err (0)
          %s189 = sshll.u32 [#allocation2], 4
          %s190 = int_to_ptr.vmem [resolvable:$true] %s189
          %192 = dma.hbm_to_vmem [thread:$0]  %s181, 16, %s190, [#allocation3]
          %s193 = sadd.s32 %s178, 1
          %s194 = sld [smem:[#allocation5 + %s193]]
          %s195 = smul.addr %s194, 16
          %s196 = scalar_lea.hbm %s1, %s195
          %s197 = scalar_lea.vmem [#allocation2], 1
          // Predicated region
          $region41: #{tpu_custom_call.1} parent=35 // pred_check
            _
          $region42: #{tpu_custom_call.1} parent=35 // pred_check_branch
            %199 = sbr.rel target = $region44
          $region43: #{tpu_custom_call.1} parent=35 // pred_region
            %200 = sst [smem:[#allocation12]] [#allocation15]
            %201 = sst [smem:[#allocation13]] [#allocation14]
          $region44: #{tpu_custom_call.1} parent=35 // pred_fallthru
            _
          %203 = shalt.err (0)
          %s205 = sshll.u32 %s197, 4
          %s206 = int_to_ptr.vmem [resolvable:$true] %s205
          %208 = dma.hbm_to_vmem [thread:$0]  %s196, 16, %s206, [#allocation3]
          %s209 = sadd.s32 %s178, 2
          %s210 = sld [smem:[#allocation5 + %s209]]
          %s211 = smul.addr %s210, 16
          %s212 = scalar_lea.hbm %s1, %s211
          %s213 = scalar_lea.vmem [#allocation2], 2
          // Predicated region
          $region45: #{tpu_custom_call.1} parent=35 // pred_check
            _
          $region46: #{tpu_custom_call.1} parent=35 // pred_check_branch
            %215 = sbr.rel target = $region48
          $region47: #{tpu_custom_call.1} parent=35 // pred_region
            %216 = sst [smem:[#allocation12]] [#allocation17]
            %217 = sst [smem:[#allocation13]] [#allocation16]
          $region48: #{tpu_custom_call.1} parent=35 // pred_fallthru
            _
          %219 = shalt.err (0)
          %s221 = sshll.u32 %s213, 4
          %s222 = int_to_ptr.vmem [resolvable:$true] %s221
          %224 = dma.hbm_to_vmem [thread:$0]  %s212, 16, %s222, [#allocation3]
          %s225 = sadd.s32 %s178, 3
          %s226 = sld [smem:[#allocation5 + %s225]]
          %s227 = smul.addr %s226, 16
          %s228 = scalar_lea.hbm %s1, %s227
          %s229 = scalar_lea.vmem [#allocation2], 3
          // Predicated region
          $region49: #{tpu_custom_call.1} parent=35 // pred_check
            _
          $region50: #{tpu_custom_call.1} parent=35 // pred_check_branch
            %231 = sbr.rel target = $region52
          $region51: #{tpu_custom_call.1} parent=35 // pred_region
            %232 = sst [smem:[#allocation12]] [#allocation19]
            %233 = sst [smem:[#allocation13]] [#allocation18]
          $region52: #{tpu_custom_call.1} parent=35 // pred_fallthru
            _
          %235 = shalt.err (0)
          %s237 = sshll.u32 %s229, 4
          %s238 = int_to_ptr.vmem [resolvable:$true] %s237
          %240 = dma.hbm_to_vmem [thread:$0]  %s228, 16, %s238, [#allocation3]
          %s241 = sadd.s32 %s178, 4
          %s242 = sld [smem:[#allocation5 + %s241]]
          %s243 = smul.addr %s242, 16
          %s244 = scalar_lea.hbm %s1, %s243
          %s245 = scalar_lea.vmem [#allocation2], 4
          // Predicated region
          $region53: #{tpu_custom_call.1} parent=35 // pred_check
            _
          $region54: #{tpu_custom_call.1} parent=35 // pred_check_branch
            %247 = sbr.rel target = $region56
          $region55: #{tpu_custom_call.1} parent=35 // pred_region
            %248 = sst [smem:[#allocation12]] [#allocation21]
            %249 = sst [smem:[#allocation13]] [#allocation20]
          $region56: #{tpu_custom_call.1} parent=35 // pred_fallthru
            _
          %251 = shalt.err (0)
          %s253 = sshll.u32 %s245, 4
          %s254 = int_to_ptr.vmem [resolvable:$true] %s253
          %256 = dma.hbm_to_vmem [thread:$0]  %s244, 16, %s254, [#allocation3]
          %s257 = sadd.s32 %s178, 5
          %s258 = sld [smem:[#allocation5 + %s257]]
          %s259 = smul.addr %s258, 16
          %s260 = scalar_lea.hbm %s1, %s259
          %s261 = scalar_lea.vmem [#allocation2], 5
          // Predicated region
          $region57: #{tpu_custom_call.1} parent=35 // pred_check
            _
          $region58: #{tpu_custom_call.1} parent=35 // pred_check_branch
            %263 = sbr.rel target = $region60
          $region59: #{tpu_custom_call.1} parent=35 // pred_region
            %264 = sst [smem:[#allocation12]] [#allocation23]
            %265 = sst [smem:[#allocation13]] [#allocation22]
          $region60: #{tpu_custom_call.1} parent=35 // pred_fallthru
            _
          %267 = shalt.err (0)
          %s269 = sshll.u32 %s261, 4
          %s270 = int_to_ptr.vmem [resolvable:$true] %s269
          %272 = dma.hbm_to_vmem [thread:$0]  %s260, 16, %s270, [#allocation3]
          %s273 = sadd.s32 %s178, 6
          %s274 = sld [smem:[#allocation5 + %s273]]
          %s275 = smul.addr %s274, 16
          %s276 = scalar_lea.hbm %s1, %s275
          %s277 = scalar_lea.vmem [#allocation2], 6
          // Predicated region
          $region61: #{tpu_custom_call.1} parent=35 // pred_check
            _
          $region62: #{tpu_custom_call.1} parent=35 // pred_check_branch
            %279 = sbr.rel target = $region64
          $region63: #{tpu_custom_call.1} parent=35 // pred_region
            %280 = sst [smem:[#allocation12]] [#allocation25]
            %281 = sst [smem:[#allocation13]] [#allocation24]
          $region64: #{tpu_custom_call.1} parent=35 // pred_fallthru
            _
          %283 = shalt.err (0)
          %s285 = sshll.u32 %s277, 4
          %s286 = int_to_ptr.vmem [resolvable:$true] %s285
          %288 = dma.hbm_to_vmem [thread:$0]  %s276, 16, %s286, [#allocation3]
          %s289 = sadd.s32 %s178, 7
          %s290 = sld [smem:[#allocation5 + %s289]]
          %s291 = smul.addr %s290, 16
          %s292 = scalar_lea.hbm %s1, %s291
          %s293 = scalar_lea.vmem [#allocation2], 7
          // Predicated region
          $region65: #{tpu_custom_call.1} parent=35 // pred_check
            _
          $region66: #{tpu_custom_call.1} parent=35 // pred_check_branch
            %295 = sbr.rel target = $region68
          $region67: #{tpu_custom_call.1} parent=35 // pred_region
            %296 = sst [smem:[#allocation12]] [#allocation27]
            %297 = sst [smem:[#allocation13]] [#allocation26]
          $region68: #{tpu_custom_call.1} parent=35 // pred_fallthru
            _
          %299 = shalt.err (0)
          %s301 = sshll.u32 %s293, 4
          %s302 = int_to_ptr.vmem [resolvable:$true] %s301
          %304 = dma.hbm_to_vmem [thread:$0]  %s292, 16, %s302, [#allocation3]
        $region36: #{tpu_custom_call.1} parent=27 // pred_fallthru
          _
        %s305 = sadd.s32 %s28, 1
        %p306 = scmp.lt.s32.totalorder %s305, 2
        // Predicated region
        $region69: #{tpu_custom_call.1} parent=27 // pred_check
          %p307 = pneg %p306
        $region70: #{tpu_custom_call.1} parent=27 // pred_check_branch
          %309 = sbr.rel (%p307) target = $region72
        $region71: #{tpu_custom_call.1} parent=27 // pred_region
          %s310 = smul.u32 %s27, 2
          %s311 = sadd.s32 %s310, %s28
          %s312 = sadd.s32 %s311, 1
          %s313 = ssub.s32 1, %s173
          %s314 = smul.u32 %s312, 8
          %s315 = sld [smem:[#allocation5 + %s314]]
          %s316 = smul.addr %s315, 16
          %s317 = scalar_lea.hbm %s1, %s316
          %s318 = smul.u32 %s313, 8
          %s319 = scalar_lea.vmem [#allocation2], %s318
          %s320 = scalar_lea.sflag [#allocation3], %s313
          // Predicated region
          $region73: #{tpu_custom_call.1} parent=71 // pred_check
            _
          $region74: #{tpu_custom_call.1} parent=71 // pred_check_branch
            %322 = sbr.rel target = $region76
          $region75: #{tpu_custom_call.1} parent=71 // pred_region
            %323 = sst [smem:[#allocation12]] [#allocation29]
            %324 = sst [smem:[#allocation13]] [#allocation28]
          $region76: #{tpu_custom_call.1} parent=71 // pred_fallthru
            _
          %326 = shalt.err (0)
          %s328 = sshll.u32 %s319, 4
          %s329 = int_to_ptr.vmem [resolvable:$true] %s328
          %331 = dma.hbm_to_vmem [thread:$0]  %s317, 16, %s329, %s320
          %s332 = sadd.s32 %s314, 1
          %s333 = sld [smem:[#allocation5 + %s332]]
          %s334 = smul.addr %s333, 16
          %s335 = scalar_lea.hbm %s1, %s334
          %s336 = sadd.s32 1, %s318
          %s337 = scalar_lea.vmem [#allocation2], %s336
          // Predicated region
          $region77: #{tpu_custom_call.1} parent=71 // pred_check
            _
          $region78: #{tpu_custom_call.1} parent=71 // pred_check_branch
            %339 = sbr.rel target = $region80
          $region79: #{tpu_custom_call.1} parent=71 // pred_region
            %340 = sst [smem:[#allocation12]] [#allocation31]
            %341 = sst [smem:[#allocation13]] [#allocation30]
          $region80: #{tpu_custom_call.1} parent=71 // pred_fallthru
            _
          %343 = shalt.err (0)
          %s345 = sshll.u32 %s337, 4
          %s346 = int_to_ptr.vmem [resolvable:$true] %s345
          %348 = dma.hbm_to_vmem [thread:$0]  %s335, 16, %s346, %s320
          %s349 = sadd.s32 %s314, 2
          %s350 = sld [smem:[#allocation5 + %s349]]
          %s351 = smul.addr %s350, 16
          %s352 = scalar_lea.hbm %s1, %s351
          %s353 = sadd.s32 2, %s318
          %s354 = scalar_lea.vmem [#allocation2], %s353
          // Predicated region
          $region81: #{tpu_custom_call.1} parent=71 // pred_check
            _
          $region82: #{tpu_custom_call.1} parent=71 // pred_check_branch
            %356 = sbr.rel target = $region84
          $region83: #{tpu_custom_call.1} parent=71 // pred_region
            %357 = sst [smem:[#allocation12]] [#allocation33]
            %358 = sst [smem:[#allocation13]] [#allocation32]
          $region84: #{tpu_custom_call.1} parent=71 // pred_fallthru
            _
          %360 = shalt.err (0)
          %s362 = sshll.u32 %s354, 4
          %s363 = int_to_ptr.vmem [resolvable:$true] %s362
          %365 = dma.hbm_to_vmem [thread:$0]  %s352, 16, %s363, %s320
          %s366 = sadd.s32 %s314, 3
          %s367 = sld [smem:[#allocation5 + %s366]]
          %s368 = smul.addr %s367, 16
          %s369 = scalar_lea.hbm %s1, %s368
          %s370 = sadd.s32 3, %s318
          %s371 = scalar_lea.vmem [#allocation2], %s370
          // Predicated region
          $region85: #{tpu_custom_call.1} parent=71 // pred_check
            _
          $region86: #{tpu_custom_call.1} parent=71 // pred_check_branch
            %373 = sbr.rel target = $region88
          $region87: #{tpu_custom_call.1} parent=71 // pred_region
            %374 = sst [smem:[#allocation12]] [#allocation35]
            %375 = sst [smem:[#allocation13]] [#allocation34]
          $region88: #{tpu_custom_call.1} parent=71 // pred_fallthru
            _
          %377 = shalt.err (0)
          %s379 = sshll.u32 %s371, 4
          %s380 = int_to_ptr.vmem [resolvable:$true] %s379
          %382 = dma.hbm_to_vmem [thread:$0]  %s369, 16, %s380, %s320
          %s383 = sadd.s32 %s314, 4
          %s384 = sld [smem:[#allocation5 + %s383]]
          %s385 = smul.addr %s384, 16
          %s386 = scalar_lea.hbm %s1, %s385
          %s387 = sadd.s32 4, %s318
          %s388 = scalar_lea.vmem [#allocation2], %s387
          // Predicated region
          $region89: #{tpu_custom_call.1} parent=71 // pred_check
            _
          $region90: #{tpu_custom_call.1} parent=71 // pred_check_branch
            %390 = sbr.rel target = $region92
          $region91: #{tpu_custom_call.1} parent=71 // pred_region
            %391 = sst [smem:[#allocation12]] [#allocation37]
            %392 = sst [smem:[#allocation13]] [#allocation36]
          $region92: #{tpu_custom_call.1} parent=71 // pred_fallthru
            _
          %394 = shalt.err (0)
          %s396 = sshll.u32 %s388, 4
          %s397 = int_to_ptr.vmem [resolvable:$true] %s396
          %399 = dma.hbm_to_vmem [thread:$0]  %s386, 16, %s397, %s320
          %s400 = sadd.s32 %s314, 5
          %s401 = sld [smem:[#allocation5 + %s400]]
          %s402 = smul.addr %s401, 16
          %s403 = scalar_lea.hbm %s1, %s402
          %s404 = sadd.s32 5, %s318
          %s405 = scalar_lea.vmem [#allocation2], %s404
          // Predicated region
          $region93: #{tpu_custom_call.1} parent=71 // pred_check
            _
          $region94: #{tpu_custom_call.1} parent=71 // pred_check_branch
            %407 = sbr.rel target = $region96
          $region95: #{tpu_custom_call.1} parent=71 // pred_region
            %408 = sst [smem:[#allocation12]] [#allocation39]
            %409 = sst [smem:[#allocation13]] [#allocation38]
          $region96: #{tpu_custom_call.1} parent=71 // pred_fallthru
            _
          %411 = shalt.err (0)
          %s413 = sshll.u32 %s405, 4
          %s414 = int_to_ptr.vmem [resolvable:$true] %s413
          %416 = dma.hbm_to_vmem [thread:$0]  %s403, 16, %s414, %s320
          %s417 = sadd.s32 %s314, 6
          %s418 = sld [smem:[#allocation5 + %s417]]
          %s419 = smul.addr %s418, 16
          %s420 = scalar_lea.hbm %s1, %s419
          %s421 = sadd.s32 6, %s318
          %s422 = scalar_lea.vmem [#allocation2], %s421
          // Predicated region
          $region97: #{tpu_custom_call.1} parent=71 // pred_check
            _
          $region98: #{tpu_custom_call.1} parent=71 // pred_check_branch
            %424 = sbr.rel target = $region100
          $region99: #{tpu_custom_call.1} parent=71 // pred_region
            %425 = sst [smem:[#allocation12]] [#allocation41]
            %426 = sst [smem:[#allocation13]] [#allocation40]
          $region100: #{tpu_custom_call.1} parent=71 // pred_fallthru
            _
          %428 = shalt.err (0)
          %s430 = sshll.u32 %s422, 4
          %s431 = int_to_ptr.vmem [resolvable:$true] %s430
          %433 = dma.hbm_to_vmem [thread:$0]  %s420, 16, %s431, %s320
          %s434 = sadd.s32 %s314, 7
          %s435 = sld [smem:[#allocation5 + %s434]]
          %s436 = smul.addr %s435, 16
          %s437 = scalar_lea.hbm %s1, %s436
          %s438 = sadd.s32 7, %s318
          %s439 = scalar_lea.vmem [#allocation2], %s438
          // Predicated region
          $region101: #{tpu_custom_call.1} parent=71 // pred_check
            _
          $region102: #{tpu_custom_call.1} parent=71 // pred_check_branch
            %441 = sbr.rel target = $region104
          $region103: #{tpu_custom_call.1} parent=71 // pred_region
            %442 = sst [smem:[#allocation12]] [#allocation43]
            %443 = sst [smem:[#allocation13]] [#allocation42]
          $region104: #{tpu_custom_call.1} parent=71 // pred_fallthru
            _
          %445 = shalt.err (0)
          %s447 = sshll.u32 %s439, 4
          %s448 = int_to_ptr.vmem [resolvable:$true] %s447
          %450 = dma.hbm_to_vmem [thread:$0]  %s437, 16, %s448, %s320
        $region72: #{tpu_custom_call.1} parent=27 // pred_fallthru
          _
        %s451 = smul.u32 %s173, 8
        %s452 = scalar_lea.vmem [#allocation2], %s451
        %s453 = scalar_lea.sflag [#allocation3], %s173
        %s454 = smul.u32 8, 1
        %s455 = sshll.u32 %s454, 4
        %456 = dma.done %s453, %s455
        %v457 = vld [vmem:[%s452] sm:$0xff]
        %v458 = vpack.c.bf16 %v457, %v457
        %v459 = vld [vmem:[#allocation6] sm:$0xf]
        %v460 = vld [vmem:[#allocation6 + $0x4] sm:$0xf]
        %v461 = vld [vmem:[#allocation6 + $0x8] sm:$0xf]
        %v462 = vld [vmem:[#allocation6 + $0xc] sm:$0xf]
        %v463 = vld [vmem:[#allocation6 + $0x10] sm:$0xf]
        %v464 = vld [vmem:[#allocation6 + $0x14] sm:$0xf]
        %v465 = vld [vmem:[#allocation6 + $0x18] sm:$0xf]
        %v466 = vld [vmem:[#allocation6 + $0x1c] sm:$0xf]
        %v467 = vld [vmem:[#allocation6 + $0x20] sm:$0xf]
        %v468 = vld [vmem:[#allocation6 + $0x24] sm:$0xf]
        %v469 = vld [vmem:[#allocation6 + $0x28] sm:$0xf]
        %v470 = vld [vmem:[#allocation6 + $0x2c] sm:$0xf]
        %v471 = vld [vmem:[#allocation6 + $0x30] sm:$0xf]
        %v472 = vld [vmem:[#allocation6 + $0x34] sm:$0xf]
        %v473 = vld [vmem:[#allocation6 + $0x38] sm:$0xf]
        %v474 = vld [vmem:[#allocation6 + $0x3c] sm:$0xf]
        %v475 = vld [vmem:[%s3] sm:$0x1]
        %v477 = vlaneseq
        %v478 = vshrl.u32 %v477, 7
        %v479 = vsub.s32 0, %v478
        %v480 = vrot.slane %v475, %v479
        %v498 = vunpack.c.l.b16 %v459
        %v499 = vunpack.c.l.b16 %v460
        %v500 = vunpack.c.l.b16 %v461
        %v501 = vunpack.c.l.b16 %v462
        %v502 = vunpack.c.l.b16 %v463
        %v503 = vunpack.c.l.b16 %v464
        %v504 = vunpack.c.l.b16 %v465
        %v505 = vunpack.c.l.b16 %v466
        %v506 = vunpack.c.l.b16 %v467
        %v507 = vunpack.c.l.b16 %v468
        %v508 = vunpack.c.l.b16 %v469
        %v509 = vunpack.c.l.b16 %v470
        %v510 = vunpack.c.l.b16 %v471
        %v511 = vunpack.c.l.b16 %v472
        %v512 = vunpack.c.l.b16 %v473
        %v513 = vunpack.c.l.b16 %v474
        %v514 = vpack.c.b16 %v499, %v498
        %v515 = vpack.c.b16 %v501, %v500
        %v516 = vpack.c.b16 %v503, %v502
        %v517 = vpack.c.b16 %v505, %v504
        %v518 = vpack.c.b16 %v507, %v506
        %v519 = vpack.c.b16 %v509, %v508
        %v520 = vpack.c.b16 %v511, %v510
        %v521 = vpack.c.b16 %v513, %v512
        %530 = vmatprep.subr.bf16.mxu0 0
        %531 = vmatpush1.bf16.msra.mxu0 %v514
        %532 = vmatprep.subr.bf16.mxu0 0
        %533 = vmatpush1.bf16.msra.mxu0 %v515
        %534 = vmatprep.subr.bf16.mxu0 0
        %535 = vmatpush1.bf16.msra.mxu0 %v516
        %536 = vmatprep.subr.bf16.mxu0 0
        %537 = vmatpush1.bf16.msra.mxu0 %v517
        %538 = vmatprep.subr.bf16.mxu0 0
        %539 = vmatpush1.bf16.msra.mxu0 %v518
        %540 = vmatprep.subr.bf16.mxu0 0
        %541 = vmatpush1.bf16.msra.mxu0 %v519
        %542 = vmatprep.subr.bf16.mxu0 0
        %543 = vmatpush1.bf16.msra.mxu0 %v520
        %544 = vmatprep.subr.bf16.mxu0 0
        %545 = vmatpush1.bf16.msra.mxu0 %v521
        %546 = vmatprep.subr.bf16.mxu0 0
        %547 = vmatpush1.bf16.msra.mxu0 0
        %548 = vmatprep.subr.bf16.mxu0 0
        %549 = vmatpush1.bf16.msra.mxu0 0
        %550 = vmatprep.subr.bf16.mxu0 0
        %551 = vmatpush1.bf16.msra.mxu0 0
        %552 = vmatprep.subr.bf16.mxu0 0
        %553 = vmatpush1.bf16.msra.mxu0 0
        %554 = vmatprep.subr.bf16.mxu0 0
        %555 = vmatpush1.bf16.msra.mxu0 0
        %556 = vmatprep.subr.bf16.mxu0 0
        %557 = vmatpush1.bf16.msra.mxu0 0
        %558 = vmatprep.subr.bf16.mxu0 0
        %559 = vmatpush1.bf16.msra.mxu0 0
        %560 = vmatprep.subr.bf16.mxu0 0
        %561 = vmatpush1.bf16.msra.mxu0 0
        %562 = vmatprep.mubr.bf16.mxu0 0
        %563 = vmatmul.mubr.bf16.gmra.mrb[0].mxu0 %v458
        %v564 = vpop.f32.mrb[0].mxu0
        %v565 = vadd.f32 %v480, %v564
        %v566 = vpop.f32.mrb[0].mxu0
        %v567 = vpop.f32.mrb[0].mxu0
        %v568 = vpop.f32.mrb[0].mxu0
        %569 = vdwg.mxu0
        %570 = vst [vmem:[%s158] sm:$0xff] %v565
        %s571 = sand.u32 %s89, 1
        %s572 = scalar_lea.sflag [#allocation8], %s571
        %s573 = sand.u32 %s89, 1
        %s574 = smul.addr %s573, 8
        %s575 = scalar_lea.vmem [#allocation9], %s574
        // Predicated region
        $region105: #{tpu_custom_call.1} parent=27 // pred_check
          %p576 = pneg %p99
        $region106: #{tpu_custom_call.1} parent=27 // pred_check_branch
          %578 = sbr.rel (%p576) target = $region108
        $region107: #{tpu_custom_call.1} parent=27 // pred_region
          %s579 = smul.u32 %s27, 2
          %s580 = sadd.s32 %s579, %s28
          %s582 = ssub.s32 128, 128
          %583 = vsyncadd %s572, %s582
          %s584 = smul.addr %s580, 128
          %s585 = scalar_lea.hbm %s4, %s584
          %s587 = sshll.u32 %s575, 4
          %s588 = int_to_ptr.vmem [resolvable:$true] %s587
          %590 = dma.vmem_to_hbm [thread:$0]  %s588, 128, %s585, %s572
        $region108: #{tpu_custom_call.1} parent=27 // pred_fallthru
          _
      $region28: #{tpu_custom_call.1} parent=5 // pred_fallthru
        _
      %p591 = scmp.le.s32.totalorder 2, %s18
      // Predicated region
      $region109: #{tpu_custom_call.1} parent=5 // pred_check
        %p592 = pneg %p591
      $region110: #{tpu_custom_call.1} parent=5 // pred_check_branch
        %594 = sbr.rel (%p592) target = $region112
      $region111: #{tpu_custom_call.1} parent=5 // pred_region
        %s595 = ssub.s32 %s18, 2
        // Predicated region
        $region113: #{tpu_custom_call.1} parent=111 // pred_check
          %p596 = pneg %p105
        $region114: #{tpu_custom_call.1} parent=111 // pred_check_branch
          %598 = sbr.rel (%p596) target = $region116
        $region115: #{tpu_custom_call.1} parent=111 // pred_region
          %s599 = sand.u32 %s90, 1
          %s600 = scalar_lea.sflag [#allocation8], %s599
          %s601 = sand.u32 %s90, 1
          %s602 = smul.addr %s601, 8
          %s603 = scalar_lea.vmem [#allocation9], %s602
          %604 = dma.done %s600, 128
        $region116: #{tpu_custom_call.1} parent=111 // pred_fallthru
          _
      $region112: #{tpu_custom_call.1} parent=5 // pred_fallthru
        _
    $region6: #{tpu_custom_call.1} parent=1 // loop_footer
      %s22 = sadd.s32 1, %s18
    $region7: #{tpu_custom_call.1} parent=1 // loop_footer_branch
      %17 = sbr.rel target = $region3
    $region8: #{tpu_custom_call.1} parent=1 // loop_exit
      _
    %605 = vsyncpa [#allocation7], 1
    %s606 = scalar_lea.sflag [#allocation7], 1
    %607 = vsyncpa %s606, 1
    %608 = vsyncpa [#allocation8], 1
    %s609 = scalar_lea.sflag [#allocation8], 1
    %610 = vsyncpa %s609, 1
  %611 = vsyncmov [#allocation3]
  %s612 = vpop.sfrf %611
  %p613 = scmp.eq.s32.totalorder %s612, 0
  %p614 = pneg %p613
  %616 = shalt.err (%p614)
  %s617 = scalar_lea.sflag [#allocation3], 1
  %618 = vsyncmov %s617
  %s619 = vpop.sfrf %618
  %p620 = scmp.eq.s32.totalorder %s619, 0
  %p621 = pneg %p620
  %623 = shalt.err (%p621)

</llo_original>
